<compile_context>
chip_gen: v7x
topology: tpu7x:2x2x1
jax: 0.10.0
libtpu: 0.0.40
codegen_flags: <defaults>
</compile_context>

<pallas_src>
import numpy as np
import jax
import jax.numpy as jnp
from jax import lax
from jax.experimental import pallas as pl
from jax.experimental.pallas import tpu as pltpu


# ----------------------------------------------------------------------------
# Kernel 1: the three stride-2 conv layers, fused; batch tiled on the lane axis
# ----------------------------------------------------------------------------
def _conv_stack_kernel(x_ref, m1_ref, b1_ref, m2_ref, b2_ref, m3_ref, b3_ref,
                       z1_ref, z2_ref, z3_ref):
    """x_ref: (Cin*H*W, BT) bf16; m_l: (N_l, N_{l-1}) bf16; b_l: (N_l, 1) f32."""

    def layer(zin_bf16, m_ref, b_ref):
        acc = jnp.dot(m_ref[...], zin_bf16,
                      preferred_element_type=jnp.float32)   # f32 accumulation
        return jnp.maximum(acc + b_ref[...], 0.0)

    z1 = layer(x_ref[...], m1_ref, b1_ref)                  # (N1, BT) f32
    z1_ref[...] = z1
    z2 = layer(z1.astype(jnp.bfloat16), m2_ref, b2_ref)     # (N2, BT) f32
    z2_ref[...] = z2
    z3 = layer(z2.astype(jnp.bfloat16), m3_ref, b3_ref)     # (N3, BT) f32
    z3_ref[...] = z3


# ----------------------------------------------------------------------------
# Kernel 2: self-expression  Y = (C1 C1^T - diag(||c_b||^2)) Z3, rank-R form
# ----------------------------------------------------------------------------
def _self_expr_kernel(z3_ref, c1_ref, c1t_ref, d_ref, y_ref):
    z3 = z3_ref[...]                                                   # (F, Bp)
    t = jnp.dot(z3, c1_ref[...], preferred_element_type=jnp.float32)   # (F, R)
    y = jnp.dot(t, c1t_ref[...], preferred_element_type=jnp.float32)   # (F, Bp)
    y_ref[...] = y - z3 * d_ref[...]


# ----------------------------------------------------------------------------
# Host-side, one-off weight folding (hoisted out of the jitted forward path)
# ----------------------------------------------------------------------------
def _layer_geometry(layer_idx, Hin, Win, k):
    """Effective geometry with the ZeroPad2d / negative-pad crop folded in."""
    if layer_idx == 0:
        # padEncL1 = (1,1,1,1), no crop
        top, left = 1, 1
        Hout = (Hin + 2 - k) // 2 + 1
        Wout = (Win + 2 - k) // 2 + 1
    else:
        # padEncL{2,3} = (1,1,2,1) followed by the (0,0,-1,0) crop: dropping
        # the first conv-output row == dropping the two top pad rows.
        top, left = 0, 1
        Hout = (Hin + 1 - k) // 2 + 1
        Wout = (Win + 2 - k) // 2 + 1
    return Hout, Wout, top, left


def _fold_conv(w, Hin, Win, layer_idx):
    """Fold pad + stride-2 conv (+crop) into one per-sample matrix M.

    out[(co,ho,wo)] = sum_{ci,hi,wi} M[(co,ho,wo),(ci,hi,wi)] * in[(ci,hi,wi)]
    """
    Cout, Cin, k, _ = w.shape
    Hout, Wout, top, left = _layer_geometry(layer_idx, Hin, Win, k)
    w = np.asarray(w, np.float32)
    V = np.zeros((k, Hout, Hin), np.float32)    # V[i,ho,hi]  = [hi == 2ho+i-top]
    Hs = np.zeros((k, Wout, Win), np.float32)   # Hs[j,wo,wi] = [wi == 2wo+j-left]
    ho = np.arange(Hout)
    wo = np.arange(Wout)
    for t in range(k):
        src = 2 * ho + t - top
        ok = (src >= 0) & (src < Hin)
        V[t, ho[ok], src[ok]] = 1.0
        srcw = 2 * wo + t - left
        okw = (srcw >= 0) & (srcw < Win)
        Hs[t, wo[okw], srcw[okw]] = 1.0
    M = np.einsum('ocij,iph,jqw->opqchw', w, V, Hs, optimize=True)
    M = M.reshape(Cout * Hout * Wout, Cin * Hin * Win)
    return M, (Cout, Hout, Wout)


def build_conv_ae_plan(w1, b1, w2, b2, w3, b3, in_shape):
    """Build the folded per-layer matrices (bf16) and biases (f32), once."""
    Cin0, H0, W0 = in_shape
    mats, biases, shapes = [], [], []
    Hin, Win = H0, W0
    for idx, (w, b) in enumerate(((w1, b1), (w2, b2), (w3, b3))):
        M, (Cout, Hout, Wout) = _fold_conv(np.asarray(w), Hin, Win, idx)
        mats.append(jnp.asarray(M, dtype=jnp.bfloat16))          # bf16 operands
        bc = np.repeat(np.asarray(b, np.float32), Hout * Wout)[:, None]
        biases.append(jnp.asarray(bc, dtype=jnp.float32))        # (N_l, 1) f32
        shapes.append((Cout, Hout, Wout))
        Hin, Win = Hout, Wout
    return {"mats": tuple(mats), "biases": tuple(biases),
            "shapes": tuple(shapes), "in_shape": (Cin0, H0, W0)}


# ----------------------------------------------------------------------------
# ConvAE forward
# ----------------------------------------------------------------------------
def make_conv_ae_forward(plan):
    M1, M2, M3 = plan["mats"]
    bc1, bc2, bc3 = plan["biases"]
    shapes = plan["shapes"]
    Cin0, H0, W0 = plan["in_shape"]
    D0 = Cin0 * H0 * W0
    N1, N2, N3 = [c * h * w for (c, h, w) in shapes]

    @jax.jit
    def forward(X, C1):
        B = X.shape[0]
        R = C1.shape[1]

        # Batch/lane tiling: fully lane-dense (128) at realistic batch sizes,
        # one small tile at the toy validation size.
        BT = 128 if B >= 128 else ((B + 7) // 8) * 8
        Bp = ((B + BT - 1) // BT) * BT
        nbt = Bp // BT

        # (B, Cin, H, W) -> (Cin*H*W, B): batch alone on the lane axis.
        Xl = X.astype(jnp.bfloat16).transpose(1, 2, 3, 0).reshape(D0, B)
        Xl = jnp.pad(Xl, ((0, 0), (0, Bp - B)))

        def tiled(rows):                       # batch-tiled activation blocks
            return pl.BlockSpec((rows, BT), lambda i: (0, i))

        def resident(shape):                   # weights: constant index map
            return pl.BlockSpec(shape, lambda i: (0, 0))

        conv_flops = 2 * Bp * (N1 * D0 + N2 * N1 + N3 * N2)
        conv_bytes = (D0 * Bp * 2
                      + (N1 * D0 + N2 * N1 + N3 * N2) * 2
                      + (N1 + N2 + N3) * 4
                      + (N1 + N2 + N3) * Bp * 4)

        z1l, z2l, z3l = pl.pallas_call(
            _conv_stack_kernel,
            out_shape=(jax.ShapeDtypeStruct((N1, Bp), jnp.float32),
                       jax.ShapeDtypeStruct((N2, Bp), jnp.float32),
                       jax.ShapeDtypeStruct((N3, Bp), jnp.float32)),
            grid=(nbt,),
            in_specs=[tiled(D0),
                      resident(M1.shape), resident(bc1.shape),
                      resident(M2.shape), resident(bc2.shape),
                      resident(M3.shape), resident(bc3.shape)],
            out_specs=(tiled(N1), tiled(N2), tiled(N3)),
            compiler_params=pltpu.CompilerParams(
                dimension_semantics=("parallel",),
                vmem_limit_bytes=32 * 1024 * 1024),
            cost_estimate=pl.CostEstimate(flops=conv_flops, transcendentals=0,
                                          bytes_accessed=conv_bytes),
        )(Xl, M1, bc1, M2, bc2, M3, bc3)

        # Self-expression (needs the full batch of Z3): rank-R, f32, tiny.
        C1f = C1.astype(jnp.float32)
        C1p = jnp.pad(C1f, ((0, Bp - B), (0, 0)))   # zero rows kill padded cols
        d = jnp.pad(jnp.sum(C1f * C1f, axis=1), (0, Bp - B))[None, :]

        def block(shape):
            return pl.BlockSpec(shape, lambda i: (0, 0))

        se_flops = 4 * N3 * Bp * R + N3 * Bp
        se_bytes = 4 * (2 * N3 * Bp + 2 * Bp * R + Bp)
        yl = pl.pallas_call(
            _self_expr_kernel,
            out_shape=jax.ShapeDtypeStruct((N3, Bp), jnp.float32),
            grid=(1,),
            in_specs=[block((N3, Bp)), block((Bp, R)), block((R, Bp)),
                      block((1, Bp))],
            out_specs=block((N3, Bp)),
            compiler_params=pltpu.CompilerParams(
                dimension_semantics=("arbitrary",),
                vmem_limit_bytes=32 * 1024 * 1024),
            cost_estimate=pl.CostEstimate(flops=se_flops, transcendentals=0,
                                          bytes_accessed=se_bytes),
        )(z3l, C1p, C1p.T, d)

        def to_nchw(zl, cs):
            c, h, w = cs
            return zl.reshape(c, h, w, Bp).transpose(3, 0, 1, 2)[:B]

        Z1 = to_nchw(z1l, shapes[0])
        Z2 = to_nchw(z2l, shapes[1])
        Z3 = to_nchw(z3l, shapes[2])
        Y = to_nchw(yl, shapes[2])
        return Z3, Y, C1, Z2, Z1

    return forward


# ----------------------------------------------------------------------------
# Pure-JAX reference of the PyTorch forward (for runtime validation)
# ----------------------------------------------------------------------------
def _reference_forward(X, params):
    w1, b1, w2, b2, w3, b3, C1 = params

    def zero_pad(x, pads):
        l, r, t, b = pads
        x = jnp.pad(x, ((0, 0), (0, 0),
                        (max(t, 0), max(b, 0)), (max(l, 0), max(r, 0))))
        H, W = x.shape[2], x.shape[3]
        return x[:, :, max(-t, 0):H - max(-b, 0), max(-l, 0):W - max(-r, 0)]

    def conv(x, w, b):
        y = lax.conv_general_dilated(
            x, w, window_strides=(2, 2), padding="VALID",
            dimension_numbers=("NCHW", "OIHW", "NCHW"),
            precision=lax.Precision.HIGHEST)
        return y + b[None, :, None, None]

    Z1 = jax.nn.relu(conv(zero_pad(X, (1, 1, 1, 1)), w1, b1))
    Z2 = jax.nn.relu(zero_pad(conv(zero_pad(Z1, (1, 1, 2, 1)), w2, b2), (0, 0, -1, 0)))
    Z3 = jax.nn.relu(zero_pad(conv(zero_pad(Z2, (1, 1, 2, 1)), w3, b3), (0, 0, -1, 0)))
    G = jnp.matmul(C1, C1.T, precision=lax.Precision.HIGHEST)
    G = G - jnp.diag(jnp.diag(G))
    Bsz = C1.shape[0]
    Y = jnp.matmul(G, Z3.reshape(Bsz, -1),
                   precision=lax.Precision.HIGHEST).reshape(Z3.shape)
    return Z3, Y, C1, Z2, Z1


# ----------------------------------------------------------------------------
# Main: deterministic params + small inputs
# ----------------------------------------------------------------------------
if __name__ == "__main__":
    kernelSize = [3, 3, 3]
    numHidden = [4, 4, 4]
    numSubj, numPerSubj = 2, 4
    rankE = 4
    batchSize = numSubj * numPerSubj            # 8
    Hin = Win = 16

    key = jax.random.PRNGKey(0)
    kx, k1, k2, k3, kb1, kb2, kb3, kc = jax.random.split(key, 8)

    X = jax.random.normal(kx, (batchSize, 1, Hin, Win), dtype=jnp.float32)
    w1 = 0.1 * jax.random.normal(k1, (numHidden[0], 1, kernelSize[0], kernelSize[0]), jnp.float32)
    b1 = 0.1 * jax.random.normal(kb1, (numHidden[0],), jnp.float32)
    w2 = 0.1 * jax.random.normal(k2, (numHidden[1], numHidden[0], kernelSize[1], kernelSize[1]), jnp.float32)
    b2 = 0.1 * jax.random.normal(kb2, (numHidden[1],), jnp.float32)
    w3 = 0.1 * jax.random.normal(k3, (numHidden[2], numHidden[1], kernelSize[2], kernelSize[2]), jnp.float32)
    b3 = 0.1 * jax.random.normal(kb3, (numHidden[2],), jnp.float32)
    # NOTE: PyTorch __init__ sets C1 = zeros((batchSize, rankE)); small random
    # values are used so the self-expression path is exercised non-trivially
    # (identical compute semantics).
    C1 = 0.1 * jax.random.normal(kc, (batchSize, rankE), jnp.float32)

    # one-off host-side weight folding, then the jitted Pallas forward
    plan = build_conv_ae_plan(w1, b1, w2, b2, w3, b3, (1, Hin, Win))
    fwd = make_conv_ae_forward(plan)

    Z3, Y, C1_out, Z2, Z1 = jax.block_until_ready(fwd(X, C1))

    # shapes implied by the PyTorch forward
    assert Z1.shape == (batchSize, numHidden[0], 8, 8)
    assert Z2.shape == (batchSize, numHidden[1], 4, 4)
    assert Z3.shape == (batchSize, numHidden[2], 2, 2)
    assert Y.shape == Z3.shape
    assert C1_out.shape == (batchSize, rankE)

    # Numerical check vs the pure-JAX f32 reference.  Conv matmuls use bf16
    # operands (f32 accumulation), so tolerance is relaxed from the old 1e-3.
    params = (w1, b1, w2, b2, w3, b3, C1)
    Z3r, Yr, _, Z2r, Z1r = _reference_forward(X, params)
    for name, got, ref in (("Z1", Z1, Z1r), ("Z2", Z2, Z2r),
                           ("Z3", Z3, Z3r), ("Y", Y, Yr)):
        ok = bool(jnp.allclose(got, ref, atol=5e-2, rtol=5e-2))
        assert ok, (name, float(jnp.max(jnp.abs(got - ref))))

    print("KERNEL_OK")
</pallas_src>

<mosaic_0001>
module attributes {stable_mosaic.version = 11 : i64} {
  func.func @_self_expr_kernel(%arg0: i32, %arg1: memref<16x8xf32, #tpu.memory_space<vmem>>, %arg2: memref<8x4xf32, #tpu.memory_space<vmem>>, %arg3: memref<4x8xf32, #tpu.memory_space<vmem>>, %arg4: memref<1x8xf32, #tpu.memory_space<vmem>>, %arg5: memref<16x8xf32, #tpu.memory_space<vmem>>) attributes {dimension_semantics = [#tpu.dimension_semantics<arbitrary>], iteration_bounds = array<i64: 1>, scalar_prefetch = 0 : i64, scratch_operands = 0 : i64, tpu.core_type = #tpu.core_type<tc>, window_params = [{pipeline_mode = #tpu.pipeline_mode<synchronous>, transform_indices = @transform_0, window_bounds = array<i64: 16, 8>}, {pipeline_mode = #tpu.pipeline_mode<synchronous>, transform_indices = @transform_1, window_bounds = array<i64: 8, 4>}, {pipeline_mode = #tpu.pipeline_mode<synchronous>, transform_indices = @transform_2, window_bounds = array<i64: 4, 8>}, {pipeline_mode = #tpu.pipeline_mode<synchronous>, transform_indices = @transform_3, window_bounds = array<i64: 1, 8>}, {pipeline_mode = #tpu.pipeline_mode<synchronous>, transform_indices = @transform_4, window_bounds = array<i64: 16, 8>}]} {
    %c0 = arith.constant 0 : index
    %c0_0 = arith.constant 0 : index
    %0 = vector.load %arg1[%c0, %c0_0] : memref<16x8xf32, #tpu.memory_space<vmem>>, vector<16x8xf32>
    %c0_1 = arith.constant 0 : index
    %c0_2 = arith.constant 0 : index
    %1 = vector.load %arg2[%c0_1, %c0_2] : memref<8x4xf32, #tpu.memory_space<vmem>>, vector<8x4xf32>
    %cst = arith.constant dense<0.000000e+00> : vector<16x4xf32>
    %2 = tpu.matmul %0, %1, %cst {dimension_numbers = #tpu.dot_dimension_numbers<[1], [0], [0], [1], [0, 0, 1, 1], [], []>} : vector<16x8xf32>, vector<8x4xf32>, vector<16x4xf32> -> vector<16x4xf32>
    %c0_3 = arith.constant 0 : index
    %c0_4 = arith.constant 0 : index
    %3 = vector.load %arg3[%c0_3, %c0_4] : memref<4x8xf32, #tpu.memory_space<vmem>>, vector<4x8xf32>
    %cst_5 = arith.constant dense<0.000000e+00> : vector<16x8xf32>
    %4 = tpu.matmul %2, %3, %cst_5 {dimension_numbers = #tpu.dot_dimension_numbers<[1], [0], [0], [1], [0, 0, 1, 1], [], []>} : vector<16x4xf32>, vector<4x8xf32>, vector<16x8xf32> -> vector<16x8xf32>
    %c0_6 = arith.constant 0 : index
    %c0_7 = arith.constant 0 : index
    %5 = vector.load %arg4[%c0_6, %c0_7] : memref<1x8xf32, #tpu.memory_space<vmem>>, vector<1x8xf32>
    %6 = vector.broadcast %5 : vector<1x8xf32> to vector<16x8xf32>
    %7 = arith.mulf %0, %6 : vector<16x8xf32>
    %8 = arith.subf %4, %7 : vector<16x8xf32>
    %c0_8 = arith.constant 0 : index
    %c0_9 = arith.constant 0 : index
    %9 = vector.load %arg5[%c0_8, %c0_9] : memref<16x8xf32, #tpu.memory_space<vmem>>, vector<16x8xf32>
    tpu.vector_store %arg5[%c0_8, %c0_9], %8 {strides = array<i32>} : memref<16x8xf32, #tpu.memory_space<vmem>>, vector<16x8xf32>,
    return
  }
  func.func @transform_0(%arg0: i32) -> (i32, i32) {
    %c0_i32 = arith.constant 0 : i32
    %c0_i32_0 = arith.constant 0 : i32
    %c0_i32_1 = arith.constant 0 : i32
    return %c0_i32, %c0_i32_0 : i32, i32
  }
  func.func @transform_1(%arg0: i32) -> (i32, i32) {
    %c0_i32 = arith.constant 0 : i32
    %c0_i32_0 = arith.constant 0 : i32
    %c0_i32_1 = arith.constant 0 : i32
    return %c0_i32, %c0_i32_0 : i32, i32
  }
  func.func @transform_2(%arg0: i32) -> (i32, i32) {
    %c0_i32 = arith.constant 0 : i32
    %c0_i32_0 = arith.constant 0 : i32
    %c0_i32_1 = arith.constant 0 : i32
    return %c0_i32, %c0_i32_0 : i32, i32
  }
  func.func @transform_3(%arg0: i32) -> (i32, i32) {
    %c0_i32 = arith.constant 0 : i32
    %c0_i32_0 = arith.constant 0 : i32
    %c0_i32_1 = arith.constant 0 : i32
    return %c0_i32, %c0_i32_0 : i32, i32
  }
  func.func @transform_4(%arg0: i32) -> (i32, i32) {
    %c0_i32 = arith.constant 0 : i32
    %c0_i32_0 = arith.constant 0 : i32
    %c0_i32_1 = arith.constant 0 : i32
    return %c0_i32, %c0_i32_0 : i32, i32
  }
}

module attributes {stable_mosaic.version = 11 : i64} {
  func.func @_conv_stack_kernel(%arg0: i32, %arg1: memref<256x8xbf16, #tpu.memory_space<vmem>>, %arg2: memref<256x256xbf16, #tpu.memory_space<vmem>>, %arg3: memref<256x1xf32, #tpu.memory_space<vmem>>, %arg4: memref<64x256xbf16, #tpu.memory_space<vmem>>, %arg5: memref<64x1xf32, #tpu.memory_space<vmem>>, %arg6: memref<16x64xbf16, #tpu.memory_space<vmem>>, %arg7: memref<16x1xf32, #tpu.memory_space<vmem>>, %arg8: memref<256x8xf32, #tpu.memory_space<vmem>>, %arg9: memref<64x8xf32, #tpu.memory_space<vmem>>, %arg10: memref<16x8xf32, #tpu.memory_space<vmem>>) attributes {dimension_semantics = [#tpu.dimension_semantics<parallel>], iteration_bounds = array<i64: 1>, scalar_prefetch = 0 : i64, scratch_operands = 0 : i64, tpu.core_type = #tpu.core_type<tc>, window_params = [{transform_indices = @transform_0, window_bounds = array<i64: 256, 8>}, {pipeline_mode = #tpu.pipeline_mode<synchronous>, transform_indices = @transform_1, window_bounds = array<i64: 256, 256>}, {pipeline_mode = #tpu.pipeline_mode<synchronous>, transform_indices = @transform_2, window_bounds = array<i64: 256, 1>}, {pipeline_mode = #tpu.pipeline_mode<synchronous>, transform_indices = @transform_3, window_bounds = array<i64: 64, 256>}, {pipeline_mode = #tpu.pipeline_mode<synchronous>, transform_indices = @transform_4, window_bounds = array<i64: 64, 1>}, {pipeline_mode = #tpu.pipeline_mode<synchronous>, transform_indices = @transform_5, window_bounds = array<i64: 16, 64>}, {pipeline_mode = #tpu.pipeline_mode<synchronous>, transform_indices = @transform_6, window_bounds = array<i64: 16, 1>}, {transform_indices = @transform_7, window_bounds = array<i64: 256, 8>}, {transform_indices = @transform_8, window_bounds = array<i64: 64, 8>}, {transform_indices = @transform_9, window_bounds = array<i64: 16, 8>}]} {
    %c0 = arith.constant 0 : index
    %c0_0 = arith.constant 0 : index
    %0 = vector.load %arg1[%c0, %c0_0] : memref<256x8xbf16, #tpu.memory_space<vmem>>, vector<256x8xbf16>
    %c0_1 = arith.constant 0 : index
    %c0_2 = arith.constant 0 : index
    %1 = vector.load %arg2[%c0_1, %c0_2] : memref<256x256xbf16, #tpu.memory_space<vmem>>, vector<256x256xbf16>
    %cst = arith.constant dense<0.000000e+00> : vector<256x8xf32>
    %2 = tpu.matmul %1, %0, %cst {dimension_numbers = #tpu.dot_dimension_numbers<[1], [0], [0], [1], [0, 0, 1, 1], [], []>} : vector<256x256xbf16>, vector<256x8xbf16>, vector<256x8xf32> -> vector<256x8xf32>
    %c0_3 = arith.constant 0 : index
    %c0_4 = arith.constant 0 : index
    %3 = vector.load %arg3[%c0_3, %c0_4] : memref<256x1xf32, #tpu.memory_space<vmem>>, vector<256x1xf32>
    %4 = vector.broadcast %3 : vector<256x1xf32> to vector<256x8xf32>
    %5 = arith.addf %2, %4 : vector<256x8xf32>
    %cst_5 = arith.constant 0.000000e+00 : f32
    %6 = vector.broadcast %cst_5 : f32 to vector<256x8xf32>
    %7 = arith.maximumf %5, %6 : vector<256x8xf32>
    %c0_6 = arith.constant 0 : index
    %c0_7 = arith.constant 0 : index
    %8 = vector.load %arg8[%c0_6, %c0_7] : memref<256x8xf32, #tpu.memory_space<vmem>>, vector<256x8xf32>
    tpu.vector_store %arg8[%c0_6, %c0_7], %7 {strides = array<i32>} : memref<256x8xf32, #tpu.memory_space<vmem>>, vector<256x8xf32>,
    %9 = arith.truncf %7 : vector<256x8xf32> to vector<256x8xbf16>
    %c0_8 = arith.constant 0 : index
    %c0_9 = arith.constant 0 : index
    %10 = vector.load %arg4[%c0_8, %c0_9] : memref<64x256xbf16, #tpu.memory_space<vmem>>, vector<64x256xbf16>
    %cst_10 = arith.constant dense<0.000000e+00> : vector<64x8xf32>
    %11 = tpu.matmul %10, %9, %cst_10 {dimension_numbers = #tpu.dot_dimension_numbers<[1], [0], [0], [1], [0, 0, 1, 1], [], []>} : vector<64x256xbf16>, vector<256x8xbf16>, vector<64x8xf32> -> vector<64x8xf32>
    %c0_11 = arith.constant 0 : index
    %c0_12 = arith.constant 0 : index
    %12 = vector.load %arg5[%c0_11, %c0_12] : memref<64x1xf32, #tpu.memory_space<vmem>>, vector<64x1xf32>
    %13 = vector.broadcast %12 : vector<64x1xf32> to vector<64x8xf32>
    %14 = arith.addf %11, %13 : vector<64x8xf32>
    %cst_13 = arith.constant 0.000000e+00 : f32
    %15 = vector.broadcast %cst_13 : f32 to vector<64x8xf32>
    %16 = arith.maximumf %14, %15 : vector<64x8xf32>
    %c0_14 = arith.constant 0 : index
    %c0_15 = arith.constant 0 : index
    %17 = vector.load %arg9[%c0_14, %c0_15] : memref<64x8xf32, #tpu.memory_space<vmem>>, vector<64x8xf32>
    tpu.vector_store %arg9[%c0_14, %c0_15], %16 {strides = array<i32>} : memref<64x8xf32, #tpu.memory_space<vmem>>, vector<64x8xf32>,
    %18 = arith.truncf %16 : vector<64x8xf32> to vector<64x8xbf16>
    %c0_16 = arith.constant 0 : index
    %c0_17 = arith.constant 0 : index
    %19 = vector.load %arg6[%c0_16, %c0_17] : memref<16x64xbf16, #tpu.memory_space<vmem>>, vector<16x64xbf16>
    %cst_18 = arith.constant dense<0.000000e+00> : vector<16x8xf32>
    %20 = tpu.matmul %19, %18, %cst_18 {dimension_numbers = #tpu.dot_dimension_numbers<[1], [0], [0], [1], [0, 0, 1, 1], [], []>} : vector<16x64xbf16>, vector<64x8xbf16>, vector<16x8xf32> -> vector<16x8xf32>
    %c0_19 = arith.constant 0 : index
    %c0_20 = arith.constant 0 : index
    %21 = vector.load %arg7[%c0_19, %c0_20] : memref<16x1xf32, #tpu.memory_space<vmem>>, vector<16x1xf32>
    %22 = vector.broadcast %21 : vector<16x1xf32> to vector<16x8xf32>
    %23 = arith.addf %20, %22 : vector<16x8xf32>
    %cst_21 = arith.constant 0.000000e+00 : f32
    %24 = vector.broadcast %cst_21 : f32 to vector<16x8xf32>
    %25 = arith.maximumf %23, %24 : vector<16x8xf32>
    %c0_22 = arith.constant 0 : index
    %c0_23 = arith.constant 0 : index
    %26 = vector.load %arg10[%c0_22, %c0_23] : memref<16x8xf32, #tpu.memory_space<vmem>>, vector<16x8xf32>
    tpu.vector_store %arg10[%c0_22, %c0_23], %25 {strides = array<i32>} : memref<16x8xf32, #tpu.memory_space<vmem>>, vector<16x8xf32>,
    return
  }
  func.func @transform_0(%arg0: i32) -> (i32, i32) {
    %c0_i32 = arith.constant 0 : i32
    %c0_i32_0 = arith.constant 0 : i32
    return %c0_i32, %arg0 : i32, i32
  }
  func.func @transform_1(%arg0: i32) -> (i32, i32) {
    %c0_i32 = arith.constant 0 : i32
    %c0_i32_0 = arith.constant 0 : i32
    %c0_i32_1 = arith.constant 0 : i32
    return %c0_i32, %c0_i32_0 : i32, i32
  }
  func.func @transform_2(%arg0: i32) -> (i32, i32) {
    %c0_i32 = arith.constant 0 : i32
    %c0_i32_0 = arith.constant 0 : i32
    %c0_i32_1 = arith.constant 0 : i32
    return %c0_i32, %c0_i32_0 : i32, i32
  }
  func.func @transform_3(%arg0: i32) -> (i32, i32) {
    %c0_i32 = arith.constant 0 : i32
    %c0_i32_0 = arith.constant 0 : i32
    %c0_i32_1 = arith.constant 0 : i32
    return %c0_i32, %c0_i32_0 : i32, i32
  }
  func.func @transform_4(%arg0: i32) -> (i32, i32) {
    %c0_i32 = arith.constant 0 : i32
    %c0_i32_0 = arith.constant 0 : i32
    %c0_i32_1 = arith.constant 0 : i32
    return %c0_i32, %c0_i32_0 : i32, i32
  }
  func.func @transform_5(%arg0: i32) -> (i32, i32) {
    %c0_i32 = arith.constant 0 : i32
    %c0_i32_0 = arith.constant 0 : i32
    %c0_i32_1 = arith.constant 0 : i32
    return %c0_i32, %c0_i32_0 : i32, i32
  }
  func.func @transform_6(%arg0: i32) -> (i32, i32) {
    %c0_i32 = arith.constant 0 : i32
    %c0_i32_0 = arith.constant 0 : i32
    %c0_i32_1 = arith.constant 0 : i32
    return %c0_i32, %c0_i32_0 : i32, i32
  }
  func.func @transform_7(%arg0: i32) -> (i32, i32) {
    %c0_i32 = arith.constant 0 : i32
    %c0_i32_0 = arith.constant 0 : i32
    return %c0_i32, %arg0 : i32, i32
  }
  func.func @transform_8(%arg0: i32) -> (i32, i32) {
    %c0_i32 = arith.constant 0 : i32
    %c0_i32_0 = arith.constant 0 : i32
    return %c0_i32, %arg0 : i32, i32
  }
  func.func @transform_9(%arg0: i32) -> (i32, i32) {
    %c0_i32 = arith.constant 0 : i32
    %c0_i32_0 = arith.constant 0 : i32
    return %c0_i32, %arg0 : i32, i32
  }
}

</mosaic_0001>

<llo_original>
// kernel: forward.3
$region0: #{forward.3}
  #allocation0 [shape = 'u32[]', space=smem, size = 0x4, offset = 0x4, fixed_abs, tag = 'smem constant byte address 0x4 - core index']
  #allocation1 [shape = 'u32[144,128]{1,0:T(1,128)}', space=vmem, size = 0x12000, scoped, tag = 'internal scratch']
  %s0 = inlined_call_operand.vmem [shape: f32[16,8], index: 0, kind: input, shape index: {}]
  %s1 = inlined_call_operand.vmem [shape: f32[8,4], index: 1, kind: input, shape index: {}]
  %s2 = inlined_call_operand.vmem [shape: f32[4,8], index: 2, kind: input, shape index: {}]
  %s3 = inlined_call_operand.vmem [shape: f32[1,8], index: 3, kind: input, shape index: {}]
  %s4 = inlined_call_operand.hbm [shape: f32[16,8], index: 4, kind: output, shape index: {}]
  %s5 = sld [smem:[#allocation0]]
  $region26: #{forward.3} parent=0
    _
  %s7 = ssub.s32 1, %s5
  %s8 = scalar_select 0, %s7, %s5
  $region1: #{forward.3} parent=0
    #allocation2 [shape = 'u8[8192]{0}', space=vmem, size = 0x2000, scoped, tag = 'output window, operand 0, single buffered']
    #allocation3 [shape = 's32[1]{0}', space=sflag, size = 0x4, scoped, tag = 'scoped memory for forward.3']
    %9 = vsyncpa [#allocation3], 0
    // Predicated region
    $region2: #{forward.3} parent=1 // pred_check
      _
    $region3: #{forward.3} parent=1 // pred_check_branch
      %11 = sbr.rel (0) target = $region5
    $region4: #{forward.3} parent=1 // pred_region
      _
    $region5: #{forward.3} parent=1 // pred_fallthru
      _
    // Predicated region
    $region6: #{forward.3} parent=1 // pred_check
      _
    $region7: #{forward.3} parent=1 // pred_check_branch
      %13 = sbr.rel (0) target = $region9
    $region8: #{forward.3} parent=1 // pred_region
      _
    $region9: #{forward.3} parent=1 // pred_fallthru
      _
    // Predicated region
    $region10: #{forward.3} parent=1 // pred_check
      _
    $region11: #{forward.3} parent=1 // pred_check_branch
      %15 = sbr.rel (0) target = $region13
    $region12: #{forward.3} parent=1 // pred_region
      _
    $region13: #{forward.3} parent=1 // pred_fallthru
      _
    // Predicated region
    $region14: #{forward.3} parent=1 // pred_check
      _
    $region15: #{forward.3} parent=1 // pred_check_branch
      %17 = sbr.rel (0) target = $region17
    $region16: #{forward.3} parent=1 // pred_region
      _
    $region17: #{forward.3} parent=1 // pred_fallthru
      _
    %v18 = vld [vmem:[%s0] sm:$0xff]
    %v19 = vld [vmem:[%s0 + $0x8] sm:$0xff]
    %v20 = vld [vmem:[%s1] sm:$0xff]
    %vm21 = vcmask 64512
    %v23 = vsel %vm21, %v18, 0
    %v26 = vsel %vm21, %v19, 0
    %28 = vmatprep.subr.mxu0 0.0
    %29 = vmatpush1.msra.mxu0 %v20
    %30 = vmatprep.subr.mxu0 0.0
    %31 = vmatpush1.msra.mxu0 0.0
    %32 = vmatprep.subr.mxu0 0.0
    %33 = vmatpush1.msra.mxu0 0.0
    %34 = vmatprep.subr.mxu0 0.0
    %35 = vmatpush1.msra.mxu0 0.0
    %36 = vmatprep.subr.mxu0 0.0
    %37 = vmatpush1.msra.mxu0 0.0
    %38 = vmatprep.subr.mxu0 0.0
    %39 = vmatpush1.msra.mxu0 0.0
    %40 = vmatprep.subr.mxu0 0.0
    %41 = vmatpush1.msra.mxu0 0.0
    %42 = vmatprep.subr.mxu0 0.0
    %43 = vmatpush1.msra.mxu0 0.0
    %44 = vmatprep.subr.mxu0 0.0
    %45 = vmatpush1.msra.mxu0 0.0
    %46 = vmatprep.subr.mxu0 0.0
    %47 = vmatpush1.msra.mxu0 0.0
    %48 = vmatprep.subr.mxu0 0.0
    %49 = vmatpush1.msra.mxu0 0.0
    %50 = vmatprep.subr.mxu0 0.0
    %51 = vmatpush1.msra.mxu0 0.0
    %52 = vmatprep.subr.mxu0 0.0
    %53 = vmatpush1.msra.mxu0 0.0
    %54 = vmatprep.subr.mxu0 0.0
    %55 = vmatpush1.msra.mxu0 0.0
    %56 = vmatprep.subr.mxu0 0.0
    %57 = vmatpush1.msra.mxu0 0.0
    %58 = vmatprep.subr.mxu0 0.0
    %59 = vmatpush1.msra.mxu0 0.0
    %60 = vmatprep.subr.mxu0 0.0
    %61 = vmatpush1.msra.mxu0 0.0
    %62 = vmatprep.subr.mxu0 0.0
    %63 = vmatpush1.msra.mxu0 0.0
    %64 = vmatprep.subr.mxu0 0.0
    %65 = vmatpush1.msra.mxu0 0.0
    %66 = vmatprep.subr.mxu0 0.0
    %67 = vmatpush1.msra.mxu0 0.0
    %68 = vmatprep.subr.mxu0 0.0
    %69 = vmatpush1.msra.mxu0 0.0
    %70 = vmatprep.subr.mxu0 0.0
    %71 = vmatpush1.msra.mxu0 0.0
    %72 = vmatprep.subr.mxu0 0.0
    %73 = vmatpush1.msra.mxu0 0.0
    %74 = vmatprep.subr.mxu0 0.0
    %75 = vmatpush1.msra.mxu0 0.0
    %76 = vmatprep.subr.mxu0 0.0
    %77 = vmatpush1.msra.mxu0 0.0
    %78 = vmatprep.subr.mxu0 0.0
    %79 = vmatpush1.msra.mxu0 0.0
    %80 = vmatprep.subr.mxu0 0.0
    %81 = vmatpush1.msra.mxu0 0.0
    %82 = vmatprep.subr.mxu0 0.0
    %83 = vmatpush1.msra.mxu0 0.0
    %84 = vmatprep.subr.mxu0 0.0
    %85 = vmatpush1.msra.mxu0 0.0
    %86 = vmatprep.subr.mxu0 0.0
    %87 = vmatpush1.msra.mxu0 0.0
    %88 = vmatprep.subr.mxu0 0.0
    %89 = vmatpush1.msra.mxu0 0.0
    %90 = vmatprep.subr.mxu0 0.0
    %91 = vmatpush1.msra.mxu0 0.0
    %92 = vmatprep.mubr.f32.mxu0 0.0
    %93 = vmatmul.mubr.f32.gmra.mrb[0].mxu0 %v23
    %v94 = vpop.f32.mrb[0].mxu0
    %v95 = vadd.f32 0.0, %v94
    %v96 = vpop.f32.mrb[0].mxu0
    %97 = vmatprep.mubr.f32.mxu0 0.0
    %98 = vmatmul.mubr.f32.gmra.mrb[0].mxu0 %v26
    %v99 = vpop.f32.mrb[0].mxu0
    %v100 = vadd.f32 0.0, %v99
    %v101 = vpop.f32.mrb[0].mxu0
    %102 = vdwg.mxu0
    %v103 = vld [vmem:[%s2] sm:$0xf]
    %vm104 = vcmask 31744
    %v106 = vsel %vm104, %v95, 0
    %v109 = vsel %vm104, %v100, 0
    %vm111 = vcmask 1043456
    %v113 = vsel %vm111, %v103, 0
    %115 = vmatprep.subr.mxu0 0.0
    %116 = vmatpush1.msra.mxu0 %v113
    %117 = vmatprep.subr.mxu0 0.0
    %118 = vmatpush1.msra.mxu0 0.0
    %119 = vmatprep.subr.mxu0 0.0
    %120 = vmatpush1.msra.mxu0 0.0
    %121 = vmatprep.subr.mxu0 0.0
    %122 = vmatpush1.msra.mxu0 0.0
    %123 = vmatprep.subr.mxu0 0.0
    %124 = vmatpush1.msra.mxu0 0.0
    %125 = vmatprep.subr.mxu0 0.0
    %126 = vmatpush1.msra.mxu0 0.0
    %127 = vmatprep.subr.mxu0 0.0
    %128 = vmatpush1.msra.mxu0 0.0
    %129 = vmatprep.subr.mxu0 0.0
    %130 = vmatpush1.msra.mxu0 0.0
    %131 = vmatprep.subr.mxu0 0.0
    %132 = vmatpush1.msra.mxu0 0.0
    %133 = vmatprep.subr.mxu0 0.0
    %134 = vmatpush1.msra.mxu0 0.0
    %135 = vmatprep.subr.mxu0 0.0
    %136 = vmatpush1.msra.mxu0 0.0
    %137 = vmatprep.subr.mxu0 0.0
    %138 = vmatpush1.msra.mxu0 0.0
    %139 = vmatprep.subr.mxu0 0.0
    %140 = vmatpush1.msra.mxu0 0.0
    %141 = vmatprep.subr.mxu0 0.0
    %142 = vmatpush1.msra.mxu0 0.0
    %143 = vmatprep.subr.mxu0 0.0
    %144 = vmatpush1.msra.mxu0 0.0
    %145 = vmatprep.subr.mxu0 0.0
    %146 = vmatpush1.msra.mxu0 0.0
    %147 = vmatprep.subr.mxu0 0.0
    %148 = vmatpush1.msra.mxu0 0.0
    %149 = vmatprep.subr.mxu0 0.0
    %150 = vmatpush1.msra.mxu0 0.0
    %151 = vmatprep.subr.mxu0 0.0
    %152 = vmatpush1.msra.mxu0 0.0
    %153 = vmatprep.subr.mxu0 0.0
    %154 = vmatpush1.msra.mxu0 0.0
    %155 = vmatprep.subr.mxu0 0.0
    %156 = vmatpush1.msra.mxu0 0.0
    %157 = vmatprep.subr.mxu0 0.0
    %158 = vmatpush1.msra.mxu0 0.0
    %159 = vmatprep.subr.mxu0 0.0
    %160 = vmatpush1.msra.mxu0 0.0
    %161 = vmatprep.subr.mxu0 0.0
    %162 = vmatpush1.msra.mxu0 0.0
    %163 = vmatprep.subr.mxu0 0.0
    %164 = vmatpush1.msra.mxu0 0.0
    %165 = vmatprep.subr.mxu0 0.0
    %166 = vmatpush1.msra.mxu0 0.0
    %167 = vmatprep.subr.mxu0 0.0
    %168 = vmatpush1.msra.mxu0 0.0
    %169 = vmatprep.subr.mxu0 0.0
    %170 = vmatpush1.msra.mxu0 0.0
    %171 = vmatprep.subr.mxu0 0.0
    %172 = vmatpush1.msra.mxu0 0.0
    %173 = vmatprep.subr.mxu0 0.0
    %174 = vmatpush1.msra.mxu0 0.0
    %175 = vmatprep.subr.mxu0 0.0
    %176 = vmatpush1.msra.mxu0 0.0
    %177 = vmatprep.subr.mxu0 0.0
    %178 = vmatpush1.msra.mxu0 0.0
    %179 = vmatprep.mubr.f32.mxu0 0.0
    %180 = vmatmul.mubr.f32.gmra.mrb[0].mxu0 %v106
    %v181 = vpop.f32.mrb[0].mxu0
    %v182 = vadd.f32 0.0, %v181
    %v183 = vpop.f32.mrb[0].mxu0
    %184 = vmatprep.mubr.f32.mxu0 0.0
    %185 = vmatmul.mubr.f32.gmra.mrb[0].mxu0 %v109
    %v186 = vpop.f32.mrb[0].mxu0
    %v187 = vadd.f32 0.0, %v186
    %v188 = vpop.f32.mrb[0].mxu0
    %189 = vdwg.mxu0
    %v190 = vld [vmem:[%s3] sm:$0x1]
    %v192 = vlaneseq
    %v193 = vshrl.u32 %v192, 7
    %v194 = vsub.s32 0, %v193
    %v195 = vrot.slane %v190, %v194
    %v197 = vmul.f32 %v18, %v195
    %v198 = vmul.f32 %v19, %v195
    %v199 = vsub.f32 %v182, %v197
    %v200 = vsub.f32 %v187, %v198
    %201 = vst.msk [vmem:[#allocation2] sm:$0xff] %vm21, %v199
    %202 = vst.msk [vmem:[#allocation2 + $0x8] sm:$0xff] %vm21, %v200
    // Predicated region
    $region18: #{forward.3} parent=1 // pred_check
      _
    $region19: #{forward.3} parent=1 // pred_check_branch
      %204 = sbr.rel (0) target = $region21
    $region20: #{forward.3} parent=1 // pred_region
      %s206 = ssub.s32 256, 256
      %207 = vsyncadd [#allocation3], %s206
      %s208 = sshll.u32 [#allocation2], 4
      %s209 = int_to_ptr.vmem [resolvable:$true] %s208
      %214 = dma.vmem_to_hbm [thread:$0]  %s209, 256, %s4, [#allocation3], 128, 128, 8
    $region21: #{forward.3} parent=1 // pred_fallthru
      _
    // Predicated region
    $region22: #{forward.3} parent=1 // pred_check
      _
    $region23: #{forward.3} parent=1 // pred_check_branch
      %216 = sbr.rel (0) target = $region25
    $region24: #{forward.3} parent=1 // pred_region
      %217 = dma.done [#allocation3], 256
    $region25: #{forward.3} parent=1 // pred_fallthru
      _
    %218 = vsyncpa [#allocation3], 1

// kernel: forward.2
$region0: #{forward.2}
  #allocation0 [shape = 'u32[]', space=smem, size = 0x4, offset = 0x4, fixed_abs, tag = 'smem constant byte address 0x4 - core index']
  #allocation1 [shape = 'u32[144,128]{1,0:T(1,128)}', space=vmem, size = 0x12000, scoped, tag = 'internal scratch']
  %s0 = inlined_call_operand.vmem [shape: bf16[256,8], index: 0, kind: input, shape index: {}]
  %s1 = inlined_call_operand.vmem [shape: bf16[256,256], index: 1, kind: input, shape index: {}]
  %s2 = inlined_call_operand.vmem [shape: f32[256,1], index: 2, kind: input, shape index: {}]
  %s3 = inlined_call_operand.vmem [shape: bf16[64,256], index: 3, kind: input, shape index: {}]
  %s4 = inlined_call_operand.vmem [shape: f32[64,1], index: 4, kind: input, shape index: {}]
  %s5 = inlined_call_operand.vmem [shape: bf16[16,64], index: 5, kind: input, shape index: {}]
  %s6 = inlined_call_operand.vmem [shape: f32[16,1], index: 6, kind: input, shape index: {}]
  %s7 = inlined_call_operand.vmem [shape: f32[256,8], index: 7, kind: output, shape index: {0}]
  %s8 = inlined_call_operand.hbm [shape: f32[64,8], index: 8, kind: output, shape index: {1}]
  %s9 = inlined_call_operand.vmem [shape: f32[16,8], index: 9, kind: output, shape index: {2}]
  %10 = xla_tuple %s7, %s8, %s9
  %s11 = sld [smem:[#allocation0]]
  $region54: #{forward.2} parent=0
    _
  %s13 = ssub.s32 1, %s11
  %s14 = scalar_select 0, %s13, %s11
  $region1: #{forward.2} parent=0
    #allocation2 [shape = 'u8[32768]{0}', space=vmem, size = 0x8000, scoped, tag = 'output window, operand 1, single buffered']
    #allocation3 [shape = 's32[1]{0}', space=sflag, size = 0x4, scoped, tag = 'scoped memory for forward.2']
    %15 = vsyncpa [#allocation3], 0
    // Predicated region
    $region2: #{forward.2} parent=1 // pred_check
      _
    $region3: #{forward.2} parent=1 // pred_check_branch
      %17 = sbr.rel (0) target = $region5
    $region4: #{forward.2} parent=1 // pred_region
      _
    $region5: #{forward.2} parent=1 // pred_fallthru
      _
    // Predicated region
    $region6: #{forward.2} parent=1 // pred_check
      _
    $region7: #{forward.2} parent=1 // pred_check_branch
      %19 = sbr.rel (0) target = $region9
    $region8: #{forward.2} parent=1 // pred_region
      _
    $region9: #{forward.2} parent=1 // pred_fallthru
      _
    // Predicated region
    $region10: #{forward.2} parent=1 // pred_check
      _
    $region11: #{forward.2} parent=1 // pred_check_branch
      %21 = sbr.rel (0) target = $region13
    $region12: #{forward.2} parent=1 // pred_region
      _
    $region13: #{forward.2} parent=1 // pred_fallthru
      _
    // Predicated region
    $region14: #{forward.2} parent=1 // pred_check
      _
    $region15: #{forward.2} parent=1 // pred_check_branch
      %23 = sbr.rel (0) target = $region17
    $region16: #{forward.2} parent=1 // pred_region
      _
    $region17: #{forward.2} parent=1 // pred_fallthru
      _
    // Predicated region
    $region18: #{forward.2} parent=1 // pred_check
      _
    $region19: #{forward.2} parent=1 // pred_check_branch
      %25 = sbr.rel (0) target = $region21
    $region20: #{forward.2} parent=1 // pred_region
      _
    $region21: #{forward.2} parent=1 // pred_fallthru
      _
    // Predicated region
    $region22: #{forward.2} parent=1 // pred_check
      _
    $region23: #{forward.2} parent=1 // pred_check_branch
      %27 = sbr.rel (0) target = $region25
    $region24: #{forward.2} parent=1 // pred_region
      _
    $region25: #{forward.2} parent=1 // pred_fallthru
      _
    // Predicated region
    $region26: #{forward.2} parent=1 // pred_check
      _
    $region27: #{forward.2} parent=1 // pred_check_branch
      %29 = sbr.rel (0) target = $region29
    $region28: #{forward.2} parent=1 // pred_region
      _
    $region29: #{forward.2} parent=1 // pred_fallthru
      _
    %v31 = vld [vmem:[%s0] sm:$0xf]
    %v32 = vld [vmem:[%s0 + $0x4] sm:$0xf]
    %v33 = vld [vmem:[%s0 + $0x8] sm:$0xf]
    %v34 = vld [vmem:[%s0 + $0xc] sm:$0xf]
    %v35 = vld [vmem:[%s0 + $0x10] sm:$0xf]
    %v36 = vld [vmem:[%s0 + $0x14] sm:$0xf]
    %v37 = vld [vmem:[%s0 + $0x18] sm:$0xf]
    %v38 = vld [vmem:[%s0 + $0x1c] sm:$0xf]
    %v39 = vld [vmem:[%s0 + $0x20] sm:$0xf]
    %v40 = vld [vmem:[%s0 + $0x24] sm:$0xf]
    %v41 = vld [vmem:[%s0 + $0x28] sm:$0xf]
    %v42 = vld [vmem:[%s0 + $0x2c] sm:$0xf]
    %v43 = vld [vmem:[%s0 + $0x30] sm:$0xf]
    %v44 = vld [vmem:[%s0 + $0x34] sm:$0xf]
    %v45 = vld [vmem:[%s0 + $0x38] sm:$0xf]
    %v46 = vld [vmem:[%s0 + $0x3c] sm:$0xf]
    %v47 = vld [vmem:[%s0 + $0x40] sm:$0xf]
    %v48 = vld [vmem:[%s0 + $0x44] sm:$0xf]
    %v49 = vld [vmem:[%s0 + $0x48] sm:$0xf]
    %v50 = vld [vmem:[%s0 + $0x4c] sm:$0xf]
    %v51 = vld [vmem:[%s0 + $0x50] sm:$0xf]
    %v52 = vld [vmem:[%s0 + $0x54] sm:$0xf]
    %v53 = vld [vmem:[%s0 + $0x58] sm:$0xf]
    %v54 = vld [vmem:[%s0 + $0x5c] sm:$0xf]
    %v55 = vld [vmem:[%s0 + $0x60] sm:$0xf]
    %v56 = vld [vmem:[%s0 + $0x64] sm:$0xf]
    %v57 = vld [vmem:[%s0 + $0x68] sm:$0xf]
    %v58 = vld [vmem:[%s0 + $0x6c] sm:$0xf]
    %v59 = vld [vmem:[%s0 + $0x70] sm:$0xf]
    %v60 = vld [vmem:[%s0 + $0x74] sm:$0xf]
    %v61 = vld [vmem:[%s0 + $0x78] sm:$0xf]
    %v62 = vld [vmem:[%s0 + $0x7c] sm:$0xf]
    %v63 = vld [vmem:[%s1] sm:$0xff]
    %v64 = vld [vmem:[%s1 + $0x8] sm:$0xff]
    %v65 = vld [vmem:[%s1 + $0x10] sm:$0xff]
    %v66 = vld [vmem:[%s1 + $0x18] sm:$0xff]
    %v67 = vld [vmem:[%s1 + $0x20] sm:$0xff]
    %v68 = vld [vmem:[%s1 + $0x28] sm:$0xff]
    %v69 = vld [vmem:[%s1 + $0x30] sm:$0xff]
    %v70 = vld [vmem:[%s1 + $0x38] sm:$0xff]
    %v71 = vld [vmem:[%s1 + $0x40] sm:$0xff]
    %v72 = vld [vmem:[%s1 + $0x48] sm:$0xff]
    %v73 = vld [vmem:[%s1 + $0x50] sm:$0xff]
    %v74 = vld [vmem:[%s1 + $0x58] sm:$0xff]
    %v75 = vld [vmem:[%s1 + $0x60] sm:$0xff]
    %v76 = vld [vmem:[%s1 + $0x68] sm:$0xff]
    %v77 = vld [vmem:[%s1 + $0x70] sm:$0xff]
    %v78 = vld [vmem:[%s1 + $0x78] sm:$0xff]
    %v79 = vld [vmem:[%s1 + $0x80] sm:$0xff]
    %v80 = vld [vmem:[%s1 + $0x88] sm:$0xff]
    %v81 = vld [vmem:[%s1 + $0x90] sm:$0xff]
    %v82 = vld [vmem:[%s1 + $0x98] sm:$0xff]
    %v83 = vld [vmem:[%s1 + $0xa0] sm:$0xff]
    %v84 = vld [vmem:[%s1 + $0xa8] sm:$0xff]
    %v85 = vld [vmem:[%s1 + $0xb0] sm:$0xff]
    %v86 = vld [vmem:[%s1 + $0xb8] sm:$0xff]
    %v87 = vld [vmem:[%s1 + $0xc0] sm:$0xff]
    %v88 = vld [vmem:[%s1 + $0xc8] sm:$0xff]
    %v89 = vld [vmem:[%s1 + $0xd0] sm:$0xff]
    %v90 = vld [vmem:[%s1 + $0xd8] sm:$0xff]
    %v91 = vld [vmem:[%s1 + $0xe0] sm:$0xff]
    %v92 = vld [vmem:[%s1 + $0xe8] sm:$0xff]
    %v93 = vld [vmem:[%s1 + $0xf0] sm:$0xff]
    %v94 = vld [vmem:[%s1 + $0xf8] sm:$0xff]
    %v95 = vld [vmem:[%s2] sm:$0xff]
    %v96 = vld [vmem:[%s2 + $0x8] sm:$0xff]
    %v97 = vld [vmem:[%s2 + $0x10] sm:$0xff]
    %v98 = vld [vmem:[%s2 + $0x18] sm:$0xff]
    %v99 = vld [vmem:[%s2 + $0x20] sm:$0xff]
    %v100 = vld [vmem:[%s2 + $0x28] sm:$0xff]
    %v101 = vld [vmem:[%s2 + $0x30] sm:$0xff]
    %v102 = vld [vmem:[%s2 + $0x38] sm:$0xff]
    %v103 = vld [vmem:[%s2 + $0x40] sm:$0xff]
    %v104 = vld [vmem:[%s2 + $0x48] sm:$0xff]
    %v105 = vld [vmem:[%s2 + $0x50] sm:$0xff]
    %v106 = vld [vmem:[%s2 + $0x58] sm:$0xff]
    %v107 = vld [vmem:[%s2 + $0x60] sm:$0xff]
    %v108 = vld [vmem:[%s2 + $0x68] sm:$0xff]
    %v109 = vld [vmem:[%s2 + $0x70] sm:$0xff]
    %v110 = vld [vmem:[%s2 + $0x78] sm:$0xff]
    %v111 = vld [vmem:[%s2 + $0x80] sm:$0xff]
    %v112 = vld [vmem:[%s2 + $0x88] sm:$0xff]
    %v113 = vld [vmem:[%s2 + $0x90] sm:$0xff]
    %v114 = vld [vmem:[%s2 + $0x98] sm:$0xff]
    %v115 = vld [vmem:[%s2 + $0xa0] sm:$0xff]
    %v116 = vld [vmem:[%s2 + $0xa8] sm:$0xff]
    %v117 = vld [vmem:[%s2 + $0xb0] sm:$0xff]
    %v118 = vld [vmem:[%s2 + $0xb8] sm:$0xff]
    %v119 = vld [vmem:[%s2 + $0xc0] sm:$0xff]
    %v120 = vld [vmem:[%s2 + $0xc8] sm:$0xff]
    %v121 = vld [vmem:[%s2 + $0xd0] sm:$0xff]
    %v122 = vld [vmem:[%s2 + $0xd8] sm:$0xff]
    %v123 = vld [vmem:[%s2 + $0xe0] sm:$0xff]
    %v124 = vld [vmem:[%s2 + $0xe8] sm:$0xff]
    %v125 = vld [vmem:[%s2 + $0xf0] sm:$0xff]
    %v126 = vld [vmem:[%s2 + $0xf8] sm:$0xff]
    %128 = vset.pattern.permute.xlu0 0
    %129 = vperm.xlu0 %128, %v95
    %v130 = vpop.permute.xlu0 %129
    %133 = vset.pattern.permute.xlu0 0
    %134 = vperm.xlu0 %133, %v96
    %v135 = vpop.permute.xlu0 %134
    %138 = vset.pattern.permute.xlu0 0
    %139 = vperm.xlu0 %138, %v97
    %v140 = vpop.permute.xlu0 %139
    %143 = vset.pattern.permute.xlu0 0
    %144 = vperm.xlu0 %143, %v98
    %v145 = vpop.permute.xlu0 %144
    %148 = vset.pattern.permute.xlu0 0
    %149 = vperm.xlu0 %148, %v99
    %v150 = vpop.permute.xlu0 %149
    %153 = vset.pattern.permute.xlu0 0
    %154 = vperm.xlu0 %153, %v100
    %v155 = vpop.permute.xlu0 %154
    %158 = vset.pattern.permute.xlu0 0
    %159 = vperm.xlu0 %158, %v101
    %v160 = vpop.permute.xlu0 %159
    %163 = vset.pattern.permute.xlu0 0
    %164 = vperm.xlu0 %163, %v102
    %v165 = vpop.permute.xlu0 %164
    %168 = vset.pattern.permute.xlu0 0
    %169 = vperm.xlu0 %168, %v103
    %v170 = vpop.permute.xlu0 %169
    %173 = vset.pattern.permute.xlu0 0
    %174 = vperm.xlu0 %173, %v104
    %v175 = vpop.permute.xlu0 %174
    %178 = vset.pattern.permute.xlu0 0
    %179 = vperm.xlu0 %178, %v105
    %v180 = vpop.permute.xlu0 %179
    %183 = vset.pattern.permute.xlu0 0
    %184 = vperm.xlu0 %183, %v106
    %v185 = vpop.permute.xlu0 %184
    %188 = vset.pattern.permute.xlu0 0
    %189 = vperm.xlu0 %188, %v107
    %v190 = vpop.permute.xlu0 %189
    %193 = vset.pattern.permute.xlu0 0
    %194 = vperm.xlu0 %193, %v108
    %v195 = vpop.permute.xlu0 %194
    %198 = vset.pattern.permute.xlu0 0
    %199 = vperm.xlu0 %198, %v109
    %v200 = vpop.permute.xlu0 %199
    %203 = vset.pattern.permute.xlu0 0
    %204 = vperm.xlu0 %203, %v110
    %v205 = vpop.permute.xlu0 %204
    %208 = vset.pattern.permute.xlu0 0
    %209 = vperm.xlu0 %208, %v111
    %v210 = vpop.permute.xlu0 %209
    %213 = vset.pattern.permute.xlu0 0
    %214 = vperm.xlu0 %213, %v112
    %v215 = vpop.permute.xlu0 %214
    %218 = vset.pattern.permute.xlu0 0
    %219 = vperm.xlu0 %218, %v113
    %v220 = vpop.permute.xlu0 %219
    %223 = vset.pattern.permute.xlu0 0
    %224 = vperm.xlu0 %223, %v114
    %v225 = vpop.permute.xlu0 %224
    %228 = vset.pattern.permute.xlu0 0
    %229 = vperm.xlu0 %228, %v115
    %v230 = vpop.permute.xlu0 %229
    %233 = vset.pattern.permute.xlu0 0
    %234 = vperm.xlu0 %233, %v116
    %v235 = vpop.permute.xlu0 %234
    %238 = vset.pattern.permute.xlu0 0
    %239 = vperm.xlu0 %238, %v117
    %v240 = vpop.permute.xlu0 %239
    %243 = vset.pattern.permute.xlu0 0
    %244 = vperm.xlu0 %243, %v118
    %v245 = vpop.permute.xlu0 %244
    %248 = vset.pattern.permute.xlu0 0
    %249 = vperm.xlu0 %248, %v119
    %v250 = vpop.permute.xlu0 %249
    %253 = vset.pattern.permute.xlu0 0
    %254 = vperm.xlu0 %253, %v120
    %v255 = vpop.permute.xlu0 %254
    %258 = vset.pattern.permute.xlu0 0
    %259 = vperm.xlu0 %258, %v121
    %v260 = vpop.permute.xlu0 %259
    %263 = vset.pattern.permute.xlu0 0
    %264 = vperm.xlu0 %263, %v122
    %v265 = vpop.permute.xlu0 %264
    %268 = vset.pattern.permute.xlu0 0
    %269 = vperm.xlu0 %268, %v123
    %v270 = vpop.permute.xlu0 %269
    %273 = vset.pattern.permute.xlu0 0
    %274 = vperm.xlu0 %273, %v124
    %v275 = vpop.permute.xlu0 %274
    %278 = vset.pattern.permute.xlu0 0
    %279 = vperm.xlu0 %278, %v125
    %v280 = vpop.permute.xlu0 %279
    %283 = vset.pattern.permute.xlu0 0
    %284 = vperm.xlu0 %283, %v126
    %v285 = vpop.permute.xlu0 %284
    %v319 = vunpack.c.l.b16 %v63
    %v320 = vunpack.c.h.b16 %v63
    %v321 = vunpack.c.l.b16 %v64
    %v322 = vunpack.c.h.b16 %v64
    %v323 = vunpack.c.l.b16 %v65
    %v324 = vunpack.c.h.b16 %v65
    %v325 = vunpack.c.l.b16 %v66
    %v326 = vunpack.c.h.b16 %v66
    %v327 = vunpack.c.l.b16 %v67
    %v328 = vunpack.c.h.b16 %v67
    %v329 = vunpack.c.l.b16 %v68
    %v330 = vunpack.c.h.b16 %v68
    %v331 = vunpack.c.l.b16 %v69
    %v332 = vunpack.c.h.b16 %v69
    %v333 = vunpack.c.l.b16 %v70
    %v334 = vunpack.c.h.b16 %v70
    %v335 = vunpack.c.l.b16 %v71
    %v336 = vunpack.c.h.b16 %v71
    %v337 = vunpack.c.l.b16 %v72
    %v338 = vunpack.c.h.b16 %v72
    %v339 = vunpack.c.l.b16 %v73
    %v340 = vunpack.c.h.b16 %v73
    %v341 = vunpack.c.l.b16 %v74
    %v342 = vunpack.c.h.b16 %v74
    %v343 = vunpack.c.l.b16 %v75
    %v344 = vunpack.c.h.b16 %v75
    %v345 = vunpack.c.l.b16 %v76
    %v346 = vunpack.c.h.b16 %v76
    %v347 = vunpack.c.l.b16 %v77
    %v348 = vunpack.c.h.b16 %v77
    %v349 = vunpack.c.l.b16 %v78
    %v350 = vunpack.c.h.b16 %v78
    %v351 = vunpack.c.l.b16 %v79
    %v352 = vunpack.c.h.b16 %v79
    %v353 = vunpack.c.l.b16 %v80
    %v354 = vunpack.c.h.b16 %v80
    %v355 = vunpack.c.l.b16 %v81
    %v356 = vunpack.c.h.b16 %v81
    %v357 = vunpack.c.l.b16 %v82
    %v358 = vunpack.c.h.b16 %v82
    %v359 = vunpack.c.l.b16 %v83
    %v360 = vunpack.c.h.b16 %v83
    %v361 = vunpack.c.l.b16 %v84
    %v362 = vunpack.c.h.b16 %v84
    %v363 = vunpack.c.l.b16 %v85
    %v364 = vunpack.c.h.b16 %v85
    %v365 = vunpack.c.l.b16 %v86
    %v366 = vunpack.c.h.b16 %v86
    %v367 = vunpack.c.l.b16 %v87
    %v368 = vunpack.c.h.b16 %v87
    %v369 = vunpack.c.l.b16 %v88
    %v370 = vunpack.c.h.b16 %v88
    %v371 = vunpack.c.l.b16 %v89
    %v372 = vunpack.c.h.b16 %v89
    %v373 = vunpack.c.l.b16 %v90
    %v374 = vunpack.c.h.b16 %v90
    %v375 = vunpack.c.l.b16 %v91
    %v376 = vunpack.c.h.b16 %v91
    %v377 = vunpack.c.l.b16 %v92
    %v378 = vunpack.c.h.b16 %v92
    %v379 = vunpack.c.l.b16 %v93
    %v380 = vunpack.c.h.b16 %v93
    %v381 = vunpack.c.l.b16 %v94
    %v382 = vunpack.c.h.b16 %v94
    %v383 = vpack.c.b16 %v321, %v319
    %v384 = vpack.c.b16 %v322, %v320
    %v385 = vpack.c.b16 %v325, %v323
    %v386 = vpack.c.b16 %v326, %v324
    %v387 = vpack.c.b16 %v329, %v327
    %v388 = vpack.c.b16 %v330, %v328
    %v389 = vpack.c.b16 %v333, %v331
    %v390 = vpack.c.b16 %v334, %v332
    %v391 = vpack.c.b16 %v337, %v335
    %v392 = vpack.c.b16 %v338, %v336
    %v393 = vpack.c.b16 %v341, %v339
    %v394 = vpack.c.b16 %v342, %v340
    %v395 = vpack.c.b16 %v345, %v343
    %v396 = vpack.c.b16 %v346, %v344
    %v397 = vpack.c.b16 %v349, %v347
    %v398 = vpack.c.b16 %v350, %v348
    %v399 = vpack.c.b16 %v353, %v351
    %v400 = vpack.c.b16 %v354, %v352
    %v401 = vpack.c.b16 %v357, %v355
    %v402 = vpack.c.b16 %v358, %v356
    %v403 = vpack.c.b16 %v361, %v359
    %v404 = vpack.c.b16 %v362, %v360
    %v405 = vpack.c.b16 %v365, %v363
    %v406 = vpack.c.b16 %v366, %v364
    %v407 = vpack.c.b16 %v369, %v367
    %v408 = vpack.c.b16 %v370, %v368
    %v409 = vpack.c.b16 %v373, %v371
    %v410 = vpack.c.b16 %v374, %v372
    %v411 = vpack.c.b16 %v377, %v375
    %v412 = vpack.c.b16 %v378, %v376
    %v413 = vpack.c.b16 %v381, %v379
    %v414 = vpack.c.b16 %v382, %v380
    %v479 = vunpack.c.l.b16 %v31
    %v480 = vunpack.c.l.b16 %v32
    %v481 = vunpack.c.l.b16 %v33
    %v482 = vunpack.c.l.b16 %v34
    %v483 = vunpack.c.l.b16 %v35
    %v484 = vunpack.c.l.b16 %v36
    %v485 = vunpack.c.l.b16 %v37
    %v486 = vunpack.c.l.b16 %v38
    %v487 = vunpack.c.l.b16 %v39
    %v488 = vunpack.c.l.b16 %v40
    %v489 = vunpack.c.l.b16 %v41
    %v490 = vunpack.c.l.b16 %v42
    %v491 = vunpack.c.l.b16 %v43
    %v492 = vunpack.c.l.b16 %v44
    %v493 = vunpack.c.l.b16 %v45
    %v494 = vunpack.c.l.b16 %v46
    %v495 = vunpack.c.l.b16 %v47
    %v496 = vunpack.c.l.b16 %v48
    %v497 = vunpack.c.l.b16 %v49
    %v498 = vunpack.c.l.b16 %v50
    %v499 = vunpack.c.l.b16 %v51
    %v500 = vunpack.c.l.b16 %v52
    %v501 = vunpack.c.l.b16 %v53
    %v502 = vunpack.c.l.b16 %v54
    %v503 = vunpack.c.l.b16 %v55
    %v504 = vunpack.c.l.b16 %v56
    %v505 = vunpack.c.l.b16 %v57
    %v506 = vunpack.c.l.b16 %v58
    %v507 = vunpack.c.l.b16 %v59
    %v508 = vunpack.c.l.b16 %v60
    %v509 = vunpack.c.l.b16 %v61
    %v510 = vunpack.c.l.b16 %v62
    %v511 = vpack.c.b16 %v480, %v479
    %v512 = vpack.c.b16 %v482, %v481
    %v513 = vpack.c.b16 %v484, %v483
    %v514 = vpack.c.b16 %v486, %v485
    %v515 = vpack.c.b16 %v488, %v487
    %v516 = vpack.c.b16 %v490, %v489
    %v517 = vpack.c.b16 %v492, %v491
    %v518 = vpack.c.b16 %v494, %v493
    %v519 = vpack.c.b16 %v496, %v495
    %v520 = vpack.c.b16 %v498, %v497
    %v521 = vpack.c.b16 %v500, %v499
    %v522 = vpack.c.b16 %v502, %v501
    %v523 = vpack.c.b16 %v504, %v503
    %v524 = vpack.c.b16 %v506, %v505
    %v525 = vpack.c.b16 %v508, %v507
    %v526 = vpack.c.b16 %v510, %v509
    %543 = vmatprep.subr.bf16.mxu0 0
    %544 = vmatpush1.bf16.msra.mxu0 %v511
    %545 = vmatprep.subr.bf16.mxu0 0
    %546 = vmatpush1.bf16.msra.mxu0 %v512
    %547 = vmatprep.subr.bf16.mxu0 0
    %548 = vmatpush1.bf16.msra.mxu0 %v513
    %549 = vmatprep.subr.bf16.mxu0 0
    %550 = vmatpush1.bf16.msra.mxu0 %v514
    %551 = vmatprep.subr.bf16.mxu0 0
    %552 = vmatpush1.bf16.msra.mxu0 %v515
    %553 = vmatprep.subr.bf16.mxu0 0
    %554 = vmatpush1.bf16.msra.mxu0 %v516
    %555 = vmatprep.subr.bf16.mxu0 0
    %556 = vmatpush1.bf16.msra.mxu0 %v517
    %557 = vmatprep.subr.bf16.mxu0 0
    %558 = vmatpush1.bf16.msra.mxu0 %v518
    %559 = vmatprep.subr.bf16.mxu0 0
    %560 = vmatpush1.bf16.msra.mxu0 %v519
    %561 = vmatprep.subr.bf16.mxu0 0
    %562 = vmatpush1.bf16.msra.mxu0 %v520
    %563 = vmatprep.subr.bf16.mxu0 0
    %564 = vmatpush1.bf16.msra.mxu0 %v521
    %565 = vmatprep.subr.bf16.mxu0 0
    %566 = vmatpush1.bf16.msra.mxu0 %v522
    %567 = vmatprep.subr.bf16.mxu0 0
    %568 = vmatpush1.bf16.msra.mxu0 %v523
    %569 = vmatprep.subr.bf16.mxu0 0
    %570 = vmatpush1.bf16.msra.mxu0 %v524
    %571 = vmatprep.subr.bf16.mxu0 0
    %572 = vmatpush1.bf16.msra.mxu0 %v525
    %573 = vmatprep.subr.bf16.mxu0 0
    %574 = vmatpush1.bf16.msra.mxu0 %v526
    %575 = vmatprep.mubr.bf16.mxu0 %v384
    %576 = vmatmul.mubr.bf16.gmra.mrb[0].mxu0 %v383
    %v577 = vpop.f32.mrb[0].mxu0
    %v578 = vadd.f32 %v130, %v577
    %v579 = vpop.f32.mrb[0].mxu0
    %v580 = vpop.f32.mrb[0].mxu0
    %v581 = vadd.f32 %v135, %v580
    %v582 = vpop.f32.mrb[0].mxu0
    %583 = vmatprep.mubr.bf16.mxu0 %v386
    %584 = vmatmul.mubr.bf16.gmra.mrb[0].mxu0 %v385
    %v585 = vpop.f32.mrb[0].mxu0
    %v586 = vadd.f32 %v140, %v585
    %v587 = vpop.f32.mrb[0].mxu0
    %v588 = vpop.f32.mrb[0].mxu0
    %v589 = vadd.f32 %v145, %v588
    %v590 = vpop.f32.mrb[0].mxu0
    %591 = vmatprep.mubr.bf16.mxu0 %v388
    %592 = vmatmul.mubr.bf16.gmra.mrb[0].mxu0 %v387
    %v593 = vpop.f32.mrb[0].mxu0
    %v594 = vadd.f32 %v150, %v593
    %v595 = vpop.f32.mrb[0].mxu0
    %v596 = vpop.f32.mrb[0].mxu0
    %v597 = vadd.f32 %v155, %v596
    %v598 = vpop.f32.mrb[0].mxu0
    %599 = vmatprep.mubr.bf16.mxu0 %v390
    %600 = vmatmul.mubr.bf16.gmra.mrb[0].mxu0 %v389
    %v601 = vpop.f32.mrb[0].mxu0
    %v602 = vadd.f32 %v160, %v601
    %v603 = vpop.f32.mrb[0].mxu0
    %v604 = vpop.f32.mrb[0].mxu0
    %v605 = vadd.f32 %v165, %v604
    %v606 = vpop.f32.mrb[0].mxu0
    %607 = vmatprep.mubr.bf16.mxu0 %v392
    %608 = vmatmul.mubr.bf16.gmra.mrb[0].mxu0 %v391
    %v609 = vpop.f32.mrb[0].mxu0
    %v610 = vadd.f32 %v170, %v609
    %v611 = vpop.f32.mrb[0].mxu0
    %v612 = vpop.f32.mrb[0].mxu0
    %v613 = vadd.f32 %v175, %v612
    %v614 = vpop.f32.mrb[0].mxu0
    %615 = vmatprep.mubr.bf16.mxu0 %v394
    %616 = vmatmul.mubr.bf16.gmra.mrb[0].mxu0 %v393
    %v617 = vpop.f32.mrb[0].mxu0
    %v618 = vadd.f32 %v180, %v617
    %v619 = vpop.f32.mrb[0].mxu0
    %v620 = vpop.f32.mrb[0].mxu0
    %v621 = vadd.f32 %v185, %v620
    %v622 = vpop.f32.mrb[0].mxu0
    %623 = vmatprep.mubr.bf16.mxu0 %v396
    %624 = vmatmul.mubr.bf16.gmra.mrb[0].mxu0 %v395
    %v625 = vpop.f32.mrb[0].mxu0
    %v626 = vadd.f32 %v190, %v625
    %v627 = vpop.f32.mrb[0].mxu0
    %v628 = vpop.f32.mrb[0].mxu0
    %v629 = vadd.f32 %v195, %v628
    %v630 = vpop.f32.mrb[0].mxu0
    %631 = vmatprep.mubr.bf16.mxu0 %v398
    %632 = vmatmul.mubr.bf16.gmra.mrb[0].mxu0 %v397
    %v633 = vpop.f32.mrb[0].mxu0
    %v634 = vadd.f32 %v200, %v633
    %v635 = vpop.f32.mrb[0].mxu0
    %v636 = vpop.f32.mrb[0].mxu0
    %v637 = vadd.f32 %v205, %v636
    %v638 = vpop.f32.mrb[0].mxu0
    %639 = vmatprep.mubr.bf16.mxu0 %v400
    %640 = vmatmul.mubr.bf16.gmra.mrb[0].mxu0 %v399
    %v641 = vpop.f32.mrb[0].mxu0
    %v642 = vadd.f32 %v210, %v641
    %v643 = vpop.f32.mrb[0].mxu0
    %v644 = vpop.f32.mrb[0].mxu0
    %v645 = vadd.f32 %v215, %v644
    %v646 = vpop.f32.mrb[0].mxu0
    %647 = vmatprep.mubr.bf16.mxu0 %v402
    %648 = vmatmul.mubr.bf16.gmra.mrb[0].mxu0 %v401
    %v649 = vpop.f32.mrb[0].mxu0
    %v650 = vadd.f32 %v220, %v649
    %v651 = vpop.f32.mrb[0].mxu0
    %v652 = vpop.f32.mrb[0].mxu0
    %v653 = vadd.f32 %v225, %v652
    %v654 = vpop.f32.mrb[0].mxu0
    %655 = vmatprep.mubr.bf16.mxu0 %v404
    %656 = vmatmul.mubr.bf16.gmra.mrb[0].mxu0 %v403
    %v657 = vpop.f32.mrb[0].mxu0
    %v658 = vadd.f32 %v230, %v657
    %v659 = vpop.f32.mrb[0].mxu0
    %v660 = vpop.f32.mrb[0].mxu0
    %v661 = vadd.f32 %v235, %v660
    %v662 = vpop.f32.mrb[0].mxu0
    %663 = vmatprep.mubr.bf16.mxu0 %v406
    %664 = vmatmul.mubr.bf16.gmra.mrb[0].mxu0 %v405
    %v665 = vpop.f32.mrb[0].mxu0
    %v666 = vadd.f32 %v240, %v665
    %v667 = vpop.f32.mrb[0].mxu0
    %v668 = vpop.f32.mrb[0].mxu0
    %v669 = vadd.f32 %v245, %v668
    %v670 = vpop.f32.mrb[0].mxu0
    %671 = vmatprep.mubr.bf16.mxu0 %v408
    %672 = vmatmul.mubr.bf16.gmra.mrb[0].mxu0 %v407
    %v673 = vpop.f32.mrb[0].mxu0
    %v674 = vadd.f32 %v250, %v673
    %v675 = vpop.f32.mrb[0].mxu0
    %v676 = vpop.f32.mrb[0].mxu0
    %v677 = vadd.f32 %v255, %v676
    %v678 = vpop.f32.mrb[0].mxu0
    %679 = vmatprep.mubr.bf16.mxu0 %v410
    %680 = vmatmul.mubr.bf16.gmra.mrb[0].mxu0 %v409
    %v681 = vpop.f32.mrb[0].mxu0
    %v682 = vadd.f32 %v260, %v681
    %v683 = vpop.f32.mrb[0].mxu0
    %v684 = vpop.f32.mrb[0].mxu0
    %v685 = vadd.f32 %v265, %v684
    %v686 = vpop.f32.mrb[0].mxu0
    %687 = vmatprep.mubr.bf16.mxu0 %v412
    %688 = vmatmul.mubr.bf16.gmra.mrb[0].mxu0 %v411
    %v689 = vpop.f32.mrb[0].mxu0
    %v690 = vadd.f32 %v270, %v689
    %v691 = vpop.f32.mrb[0].mxu0
    %v692 = vpop.f32.mrb[0].mxu0
    %v693 = vadd.f32 %v275, %v692
    %v694 = vpop.f32.mrb[0].mxu0
    %695 = vmatprep.mubr.bf16.mxu0 %v414
    %696 = vmatmul.mubr.bf16.gmra.mrb[0].mxu0 %v413
    %v697 = vpop.f32.mrb[0].mxu0
    %v698 = vadd.f32 %v280, %v697
    %v699 = vpop.f32.mrb[0].mxu0
    %v700 = vpop.f32.mrb[0].mxu0
    %v701 = vadd.f32 %v285, %v700
    %v702 = vpop.f32.mrb[0].mxu0
    %703 = vdwg.mxu0
    %v704 = vmax.f32 %v578, 0.0
    %v705 = vmax.f32 %v581, 0.0
    %v706 = vmax.f32 %v586, 0.0
    %v707 = vmax.f32 %v589, 0.0
    %v708 = vmax.f32 %v594, 0.0
    %v709 = vmax.f32 %v597, 0.0
    %v710 = vmax.f32 %v602, 0.0
    %v711 = vmax.f32 %v605, 0.0
    %v712 = vmax.f32 %v610, 0.0
    %v713 = vmax.f32 %v613, 0.0
    %v714 = vmax.f32 %v618, 0.0
    %v715 = vmax.f32 %v621, 0.0
    %v716 = vmax.f32 %v626, 0.0
    %v717 = vmax.f32 %v629, 0.0
    %v718 = vmax.f32 %v634, 0.0
    %v719 = vmax.f32 %v637, 0.0
    %v720 = vmax.f32 %v642, 0.0
    %v721 = vmax.f32 %v645, 0.0
    %v722 = vmax.f32 %v650, 0.0
    %v723 = vmax.f32 %v653, 0.0
    %v724 = vmax.f32 %v658, 0.0
    %v725 = vmax.f32 %v661, 0.0
    %v726 = vmax.f32 %v666, 0.0
    %v727 = vmax.f32 %v669, 0.0
    %v728 = vmax.f32 %v674, 0.0
    %v729 = vmax.f32 %v677, 0.0
    %v730 = vmax.f32 %v682, 0.0
    %v731 = vmax.f32 %v685, 0.0
    %v732 = vmax.f32 %v690, 0.0
    %v733 = vmax.f32 %v693, 0.0
    %v734 = vmax.f32 %v698, 0.0
    %v735 = vmax.f32 %v701, 0.0
    %vm736 = vcmask 64512
    %737 = vst.msk [vmem:[%s7] sm:$0xff] %vm736, %v704
    %738 = vst.msk [vmem:[%s7 + $0x8] sm:$0xff] %vm736, %v705
    %739 = vst.msk [vmem:[%s7 + $0x10] sm:$0xff] %vm736, %v706
    %740 = vst.msk [vmem:[%s7 + $0x18] sm:$0xff] %vm736, %v707
    %741 = vst.msk [vmem:[%s7 + $0x20] sm:$0xff] %vm736, %v708
    %742 = vst.msk [vmem:[%s7 + $0x28] sm:$0xff] %vm736, %v709
    %743 = vst.msk [vmem:[%s7 + $0x30] sm:$0xff] %vm736, %v710
    %744 = vst.msk [vmem:[%s7 + $0x38] sm:$0xff] %vm736, %v711
    %745 = vst.msk [vmem:[%s7 + $0x40] sm:$0xff] %vm736, %v712
    %746 = vst.msk [vmem:[%s7 + $0x48] sm:$0xff] %vm736, %v713
    %747 = vst.msk [vmem:[%s7 + $0x50] sm:$0xff] %vm736, %v714
    %748 = vst.msk [vmem:[%s7 + $0x58] sm:$0xff] %vm736, %v715
    %749 = vst.msk [vmem:[%s7 + $0x60] sm:$0xff] %vm736, %v716
    %750 = vst.msk [vmem:[%s7 + $0x68] sm:$0xff] %vm736, %v717
    %751 = vst.msk [vmem:[%s7 + $0x70] sm:$0xff] %vm736, %v718
    %752 = vst.msk [vmem:[%s7 + $0x78] sm:$0xff] %vm736, %v719
    %753 = vst.msk [vmem:[%s7 + $0x80] sm:$0xff] %vm736, %v720
    %754 = vst.msk [vmem:[%s7 + $0x88] sm:$0xff] %vm736, %v721
    %755 = vst.msk [vmem:[%s7 + $0x90] sm:$0xff] %vm736, %v722
    %756 = vst.msk [vmem:[%s7 + $0x98] sm:$0xff] %vm736, %v723
    %757 = vst.msk [vmem:[%s7 + $0xa0] sm:$0xff] %vm736, %v724
    %758 = vst.msk [vmem:[%s7 + $0xa8] sm:$0xff] %vm736, %v725
    %759 = vst.msk [vmem:[%s7 + $0xb0] sm:$0xff] %vm736, %v726
    %760 = vst.msk [vmem:[%s7 + $0xb8] sm:$0xff] %vm736, %v727
    %761 = vst.msk [vmem:[%s7 + $0xc0] sm:$0xff] %vm736, %v728
    %762 = vst.msk [vmem:[%s7 + $0xc8] sm:$0xff] %vm736, %v729
    %763 = vst.msk [vmem:[%s7 + $0xd0] sm:$0xff] %vm736, %v730
    %764 = vst.msk [vmem:[%s7 + $0xd8] sm:$0xff] %vm736, %v731
    %765 = vst.msk [vmem:[%s7 + $0xe0] sm:$0xff] %vm736, %v732
    %766 = vst.msk [vmem:[%s7 + $0xe8] sm:$0xff] %vm736, %v733
    %767 = vst.msk [vmem:[%s7 + $0xf0] sm:$0xff] %vm736, %v734
    %768 = vst.msk [vmem:[%s7 + $0xf8] sm:$0xff] %vm736, %v735
    %v769 = vpack.c.bf16 %v705, %v704
    %v770 = vpack.c.bf16 %v707, %v706
    %v771 = vpack.c.bf16 %v709, %v708
    %v772 = vpack.c.bf16 %v711, %v710
    %v773 = vpack.c.bf16 %v713, %v712
    %v774 = vpack.c.bf16 %v715, %v714
    %v775 = vpack.c.bf16 %v717, %v716
    %v776 = vpack.c.bf16 %v719, %v718
    %v777 = vpack.c.bf16 %v721, %v720
    %v778 = vpack.c.bf16 %v723, %v722
    %v779 = vpack.c.bf16 %v725, %v724
    %v780 = vpack.c.bf16 %v727, %v726
    %v781 = vpack.c.bf16 %v729, %v728
    %v782 = vpack.c.bf16 %v731, %v730
    %v783 = vpack.c.bf16 %v733, %v732
    %v784 = vpack.c.bf16 %v735, %v734
    %v785 = vld [vmem:[%s3] sm:$0xff]
    %v786 = vld [vmem:[%s3 + $0x8] sm:$0xff]
    %v787 = vld [vmem:[%s3 + $0x10] sm:$0xff]
    %v788 = vld [vmem:[%s3 + $0x18] sm:$0xff]
    %v789 = vld [vmem:[%s3 + $0x20] sm:$0xff]
    %v790 = vld [vmem:[%s3 + $0x28] sm:$0xff]
    %v791 = vld [vmem:[%s3 + $0x30] sm:$0xff]
    %v792 = vld [vmem:[%s3 + $0x38] sm:$0xff]
    %v793 = vld [vmem:[%s4] sm:$0xff]
    %v794 = vld [vmem:[%s4 + $0x8] sm:$0xff]
    %v795 = vld [vmem:[%s4 + $0x10] sm:$0xff]
    %v796 = vld [vmem:[%s4 + $0x18] sm:$0xff]
    %v797 = vld [vmem:[%s4 + $0x20] sm:$0xff]
    %v798 = vld [vmem:[%s4 + $0x28] sm:$0xff]
    %v799 = vld [vmem:[%s4 + $0x30] sm:$0xff]
    %v800 = vld [vmem:[%s4 + $0x38] sm:$0xff]
    %802 = vset.pattern.permute.xlu0 0
    %803 = vperm.xlu0 %802, %v793
    %v804 = vpop.permute.xlu0 %803
    %807 = vset.pattern.permute.xlu0 0
    %808 = vperm.xlu0 %807, %v794
    %v809 = vpop.permute.xlu0 %808
    %812 = vset.pattern.permute.xlu0 0
    %813 = vperm.xlu0 %812, %v795
    %v814 = vpop.permute.xlu0 %813
    %817 = vset.pattern.permute.xlu0 0
    %818 = vperm.xlu0 %817, %v796
    %v819 = vpop.permute.xlu0 %818
    %822 = vset.pattern.permute.xlu0 0
    %823 = vperm.xlu0 %822, %v797
    %v824 = vpop.permute.xlu0 %823
    %827 = vset.pattern.permute.xlu0 0
    %828 = vperm.xlu0 %827, %v798
    %v829 = vpop.permute.xlu0 %828
    %832 = vset.pattern.permute.xlu0 0
    %833 = vperm.xlu0 %832, %v799
    %v834 = vpop.permute.xlu0 %833
    %837 = vset.pattern.permute.xlu0 0
    %838 = vperm.xlu0 %837, %v800
    %v839 = vpop.permute.xlu0 %838
    %v849 = vunpack.c.l.b16 %v785
    %v850 = vunpack.c.h.b16 %v785
    %v851 = vunpack.c.l.b16 %v786
    %v852 = vunpack.c.h.b16 %v786
    %v853 = vunpack.c.l.b16 %v787
    %v854 = vunpack.c.h.b16 %v787
    %v855 = vunpack.c.l.b16 %v788
    %v856 = vunpack.c.h.b16 %v788
    %v857 = vunpack.c.l.b16 %v789
    %v858 = vunpack.c.h.b16 %v789
    %v859 = vunpack.c.l.b16 %v790
    %v860 = vunpack.c.h.b16 %v790
    %v861 = vunpack.c.l.b16 %v791
    %v862 = vunpack.c.h.b16 %v791
    %v863 = vunpack.c.l.b16 %v792
    %v864 = vunpack.c.h.b16 %v792
    %v865 = vpack.c.b16 %v851, %v849
    %v866 = vpack.c.b16 %v852, %v850
    %v867 = vpack.c.b16 %v855, %v853
    %v868 = vpack.c.b16 %v856, %v854
    %v869 = vpack.c.b16 %v859, %v857
    %v870 = vpack.c.b16 %v860, %v858
    %v871 = vpack.c.b16 %v863, %v861
    %v872 = vpack.c.b16 %v864, %v862
    %881 = vmatprep.subr.bf16.mxu0 0
    %882 = vmatpush1.bf16.msra.mxu0 %v769
    %883 = vmatprep.subr.bf16.mxu0 0
    %884 = vmatpush1.bf16.msra.mxu0 %v770
    %885 = vmatprep.subr.bf16.mxu0 0
    %886 = vmatpush1.bf16.msra.mxu0 %v771
    %887 = vmatprep.subr.bf16.mxu0 0
    %888 = vmatpush1.bf16.msra.mxu0 %v772
    %889 = vmatprep.subr.bf16.mxu0 0
    %890 = vmatpush1.bf16.msra.mxu0 %v773
    %891 = vmatprep.subr.bf16.mxu0 0
    %892 = vmatpush1.bf16.msra.mxu0 %v774
    %893 = vmatprep.subr.bf16.mxu0 0
    %894 = vmatpush1.bf16.msra.mxu0 %v775
    %895 = vmatprep.subr.bf16.mxu0 0
    %896 = vmatpush1.bf16.msra.mxu0 %v776
    %897 = vmatprep.subr.bf16.mxu0 0
    %898 = vmatpush1.bf16.msra.mxu0 %v777
    %899 = vmatprep.subr.bf16.mxu0 0
    %900 = vmatpush1.bf16.msra.mxu0 %v778
    %901 = vmatprep.subr.bf16.mxu0 0
    %902 = vmatpush1.bf16.msra.mxu0 %v779
    %903 = vmatprep.subr.bf16.mxu0 0
    %904 = vmatpush1.bf16.msra.mxu0 %v780
    %905 = vmatprep.subr.bf16.mxu0 0
    %906 = vmatpush1.bf16.msra.mxu0 %v781
    %907 = vmatprep.subr.bf16.mxu0 0
    %908 = vmatpush1.bf16.msra.mxu0 %v782
    %909 = vmatprep.subr.bf16.mxu0 0
    %910 = vmatpush1.bf16.msra.mxu0 %v783
    %911 = vmatprep.subr.bf16.mxu0 0
    %912 = vmatpush1.bf16.msra.mxu0 %v784
    %913 = vmatprep.mubr.bf16.mxu0 %v866
    %914 = vmatmul.mubr.bf16.gmra.mrb[0].mxu0 %v865
    %v915 = vpop.f32.mrb[0].mxu0
    %v916 = vadd.f32 %v804, %v915
    %v917 = vpop.f32.mrb[0].mxu0
    %v918 = vpop.f32.mrb[0].mxu0
    %v919 = vadd.f32 %v809, %v918
    %v920 = vpop.f32.mrb[0].mxu0
    %921 = vmatprep.mubr.bf16.mxu0 %v868
    %922 = vmatmul.mubr.bf16.gmra.mrb[0].mxu0 %v867
    %v923 = vpop.f32.mrb[0].mxu0
    %v924 = vadd.f32 %v814, %v923
    %v925 = vpop.f32.mrb[0].mxu0
    %v926 = vpop.f32.mrb[0].mxu0
    %v927 = vadd.f32 %v819, %v926
    %v928 = vpop.f32.mrb[0].mxu0
    %929 = vmatprep.mubr.bf16.mxu0 %v870
    %930 = vmatmul.mubr.bf16.gmra.mrb[0].mxu0 %v869
    %v931 = vpop.f32.mrb[0].mxu0
    %v932 = vadd.f32 %v824, %v931
    %v933 = vpop.f32.mrb[0].mxu0
    %v934 = vpop.f32.mrb[0].mxu0
    %v935 = vadd.f32 %v829, %v934
    %v936 = vpop.f32.mrb[0].mxu0
    %937 = vmatprep.mubr.bf16.mxu0 %v872
    %938 = vmatmul.mubr.bf16.gmra.mrb[0].mxu0 %v871
    %v939 = vpop.f32.mrb[0].mxu0
    %v940 = vadd.f32 %v834, %v939
    %v941 = vpop.f32.mrb[0].mxu0
    %v942 = vpop.f32.mrb[0].mxu0
    %v943 = vadd.f32 %v839, %v942
    %v944 = vpop.f32.mrb[0].mxu0
    %945 = vdwg.mxu0
    %v946 = vmax.f32 %v916, 0.0
    %v947 = vmax.f32 %v919, 0.0
    %v948 = vmax.f32 %v924, 0.0
    %v949 = vmax.f32 %v927, 0.0
    %v950 = vmax.f32 %v932, 0.0
    %v951 = vmax.f32 %v935, 0.0
    %v952 = vmax.f32 %v940, 0.0
    %v953 = vmax.f32 %v943, 0.0
    %954 = vst.msk [vmem:[#allocation2] sm:$0xff] %vm736, %v946
    %955 = vst.msk [vmem:[#allocation2 + $0x8] sm:$0xff] %vm736, %v947
    %956 = vst.msk [vmem:[#allocation2 + $0x10] sm:$0xff] %vm736, %v948
    %957 = vst.msk [vmem:[#allocation2 + $0x18] sm:$0xff] %vm736, %v949
    %958 = vst.msk [vmem:[#allocation2 + $0x20] sm:$0xff] %vm736, %v950
    %959 = vst.msk [vmem:[#allocation2 + $0x28] sm:$0xff] %vm736, %v951
    %960 = vst.msk [vmem:[#allocation2 + $0x30] sm:$0xff] %vm736, %v952
    %961 = vst.msk [vmem:[#allocation2 + $0x38] sm:$0xff] %vm736, %v953
    %v962 = vpack.c.bf16 %v947, %v946
    %v963 = vpack.c.bf16 %v949, %v948
    %v964 = vpack.c.bf16 %v951, %v950
    %v965 = vpack.c.bf16 %v953, %v952
    %v966 = vld [vmem:[%s5] sm:$0xf]
    %v967 = vld [vmem:[%s5 + $0x4] sm:$0xf]
    %v968 = vld [vmem:[%s6] sm:$0xff]
    %v969 = vld [vmem:[%s6 + $0x8] sm:$0xff]
    %971 = vset.pattern.permute.xlu0 0
    %972 = vperm.xlu0 %971, %v968
    %v973 = vpop.permute.xlu0 %972
    %976 = vset.pattern.permute.xlu0 0
    %977 = vperm.xlu0 %976, %v969
    %v978 = vpop.permute.xlu0 %977
    %v982 = vunpack.c.l.b16 %v966
    %v983 = vunpack.c.l.b16 %v967
    %v984 = vpack.c.b16 %v983, %v982
    %vm985 = vcmask 523264
    %v987 = vsel %vm985, %v984, 0
    %989 = vmatprep.subr.bf16.mxu0 0
    %990 = vmatpush1.bf16.msra.mxu0 %v962
    %991 = vmatprep.subr.bf16.mxu0 0
    %992 = vmatpush1.bf16.msra.mxu0 %v963
    %993 = vmatprep.subr.bf16.mxu0 0
    %994 = vmatpush1.bf16.msra.mxu0 %v964
    %995 = vmatprep.subr.bf16.mxu0 0
    %996 = vmatpush1.bf16.msra.mxu0 %v965
    %997 = vmatprep.subr.bf16.mxu0 0
    %998 = vmatpush1.bf16.msra.mxu0 0
    %999 = vmatprep.subr.bf16.mxu0 0
    %1000 = vmatpush1.bf16.msra.mxu0 0
    %1001 = vmatprep.subr.bf16.mxu0 0
    %1002 = vmatpush1.bf16.msra.mxu0 0
    %1003 = vmatprep.subr.bf16.mxu0 0
    %1004 = vmatpush1.bf16.msra.mxu0 0
    %1005 = vmatprep.subr.bf16.mxu0 0
    %1006 = vmatpush1.bf16.msra.mxu0 0
    %1007 = vmatprep.subr.bf16.mxu0 0
    %1008 = vmatpush1.bf16.msra.mxu0 0
    %1009 = vmatprep.subr.bf16.mxu0 0
    %1010 = vmatpush1.bf16.msra.mxu0 0
    %1011 = vmatprep.subr.bf16.mxu0 0
    %1012 = vmatpush1.bf16.msra.mxu0 0
    %1013 = vmatprep.subr.bf16.mxu0 0
    %1014 = vmatpush1.bf16.msra.mxu0 0
    %1015 = vmatprep.subr.bf16.mxu0 0
    %1016 = vmatpush1.bf16.msra.mxu0 0
    %1017 = vmatprep.subr.bf16.mxu0 0
    %1018 = vmatpush1.bf16.msra.mxu0 0
    %1019 = vmatprep.subr.bf16.mxu0 0
    %1020 = vmatpush1.bf16.msra.mxu0 0
    %1021 = vmatprep.mubr.bf16.mxu0 0
    %1022 = vmatmul.mubr.bf16.gmra.mrb[0].mxu0 %v987
    %v1023 = vpop.f32.mrb[0].mxu0
    %v1024 = vadd.f32 %v973, %v1023
    %v1025 = vpop.f32.mrb[0].mxu0
    %v1026 = vpop.f32.mrb[0].mxu0
    %v1027 = vadd.f32 %v978, %v1026
    %v1028 = vpop.f32.mrb[0].mxu0
    %1029 = vdwg.mxu0
    %v1030 = vmax.f32 %v1024, 0.0
    %v1031 = vmax.f32 %v1027, 0.0
    %1032 = vst.msk [vmem:[%s9] sm:$0xff] %vm736, %v1030
    %1033 = vst.msk [vmem:[%s9 + $0x8] sm:$0xff] %vm736, %v1031
    // Predicated region
    $region30: #{forward.2} parent=1 // pred_check
      _
    $region31: #{forward.2} parent=1 // pred_check_branch
      %1035 = sbr.rel (0) target = $region33
    $region32: #{forward.2} parent=1 // pred_region
      _
    $region33: #{forward.2} parent=1 // pred_fallthru
      _
    // Predicated region
    $region34: #{forward.2} parent=1 // pred_check
      _
    $region35: #{forward.2} parent=1 // pred_check_branch
      %1037 = sbr.rel (0) target = $region37
    $region36: #{forward.2} parent=1 // pred_region
      %s1039 = ssub.s32 1024, 1024
      %1040 = vsyncadd [#allocation3], %s1039
      %s1041 = sshll.u32 [#allocation2], 4
      %s1042 = int_to_ptr.vmem [resolvable:$true] %s1041
      %1047 = dma.vmem_to_hbm [thread:$0]  %s1042, 1024, %s8, [#allocation3], 128, 128, 8
    $region37: #{forward.2} parent=1 // pred_fallthru
      _
    // Predicated region
    $region38: #{forward.2} parent=1 // pred_check
      _
    $region39: #{forward.2} parent=1 // pred_check_branch
      %1049 = sbr.rel (0) target = $region41
    $region40: #{forward.2} parent=1 // pred_region
      _
    $region41: #{forward.2} parent=1 // pred_fallthru
      _
    // Predicated region
    $region42: #{forward.2} parent=1 // pred_check
      _
    $region43: #{forward.2} parent=1 // pred_check_branch
      %1051 = sbr.rel (0) target = $region45
    $region44: #{forward.2} parent=1 // pred_region
      _
    $region45: #{forward.2} parent=1 // pred_fallthru
      _
    // Predicated region
    $region46: #{forward.2} parent=1 // pred_check
      _
    $region47: #{forward.2} parent=1 // pred_check_branch
      %1053 = sbr.rel (0) target = $region49
    $region48: #{forward.2} parent=1 // pred_region
      %1054 = dma.done [#allocation3], 1024
    $region49: #{forward.2} parent=1 // pred_fallthru
      _
    // Predicated region
    $region50: #{forward.2} parent=1 // pred_check
      _
    $region51: #{forward.2} parent=1 // pred_check_branch
      %1056 = sbr.rel (0) target = $region53
    $region52: #{forward.2} parent=1 // pred_region
      _
    $region53: #{forward.2} parent=1 // pred_fallthru
      _
    %1057 = vsyncpa [#allocation3], 1

</llo_original>
